<compile_context>
chip_gen: v6e
topology: v6e:2x2x1
jax: 0.10.0
libtpu: 0.0.40
codegen_flags: <defaults>
</compile_context>

<pallas_src>
import functools
import math

import jax
import jax.numpy as jnp
from jax import lax
from jax.experimental import pallas as pl
from jax.experimental.pallas import tpu as pltpu


def _seq_tile(n, target):
    """Largest tile <= target that divides n and is a multiple of 8 (falls
    back to the whole axis, which always satisfies the BlockSpec rules)."""
    if n <= target:
        return n
    for t in range(target, 7, -1):
        if n % t == 0 and t % 8 == 0:
            return t
    # TODO(synk): ragged sequence lengths would need explicit key masking.
    return n


# ----------------------------- linear kernels ------------------------------

def _linear_kernel(x_ref, w_ref, b_ref, o_ref):
    # x: (TM, Din), w: (Din, Dout) bf16, b: (1, Dout) f32 -> o: (TM, Dout)
    x = x_ref[...].astype(jnp.bfloat16)
    acc = jnp.dot(x, w_ref[...], preferred_element_type=jnp.float32)
    o_ref[...] = (acc + b_ref[...]).astype(o_ref.dtype)


def linear(x2d, w, b, *, out_dtype=jnp.bfloat16, row_tile=512):
    """Row-tiled x2d @ w + b.  bf16 MXU operands, f32 accumulation."""
    N, Din = x2d.shape
    Dout = w.shape[1]
    tm = N if N <= row_tile else row_tile
    # TODO(synk): pipeline_mode=pl.Buffered(1) on the constant w/b blocks would
    # halve their VMEM footprint; only matters at very large d_model on v7x.
    return pl.pallas_call(
        _linear_kernel,
        out_shape=jax.ShapeDtypeStruct((N, Dout), out_dtype),
        grid=(pl.cdiv(N, tm),),
        in_specs=[
            pl.BlockSpec((tm, Din), lambda i: (i, 0)),
            pl.BlockSpec((Din, Dout), lambda i: (0, 0)),
            pl.BlockSpec((1, Dout), lambda i: (0, 0)),
        ],
        out_specs=pl.BlockSpec((tm, Dout), lambda i: (i, 0)),
        compiler_params=pltpu.CompilerParams(
            dimension_semantics=("parallel",)),
    )(x2d, w, b)


def _fused_qkv_kernel(x_ref, w_ref, bq_ref, bk_ref, bv_ref,
                      q_ref, k_ref, v_ref, *, dq, dk):
    # One wide matmul against W_q|W_k|W_v; the activation tile is read once.
    x = x_ref[...].astype(jnp.bfloat16)
    acc = jnp.dot(x, w_ref[...], preferred_element_type=jnp.float32)
    q_ref[...] = (acc[:, :dq] + bq_ref[...]).astype(q_ref.dtype)
    k_ref[...] = (acc[:, dq:dq + dk] + bk_ref[...]).astype(k_ref.dtype)
    v_ref[...] = (acc[:, dq + dk:] + bv_ref[...]).astype(v_ref.dtype)


def fused_qkv(x2d, w_qkv, bq, bk, bv, dq, dk, dv, *,
              out_dtype=jnp.bfloat16, row_tile=512):
    N, Din = x2d.shape
    tm = N if N <= row_tile else row_tile
    kernel = functools.partial(_fused_qkv_kernel, dq=dq, dk=dk)
    return pl.pallas_call(
        kernel,
        out_shape=(jax.ShapeDtypeStruct((N, dq), out_dtype),
                   jax.ShapeDtypeStruct((N, dk), out_dtype),
                   jax.ShapeDtypeStruct((N, dv), out_dtype)),
        grid=(pl.cdiv(N, tm),),
        in_specs=[
            pl.BlockSpec((tm, Din), lambda i: (i, 0)),
            pl.BlockSpec((Din, dq + dk + dv), lambda i: (0, 0)),
            pl.BlockSpec((1, dq), lambda i: (0, 0)),
            pl.BlockSpec((1, dk), lambda i: (0, 0)),
            pl.BlockSpec((1, dv), lambda i: (0, 0)),
        ],
        out_specs=(pl.BlockSpec((tm, dq), lambda i: (i, 0)),
                   pl.BlockSpec((tm, dk), lambda i: (i, 0)),
                   pl.BlockSpec((tm, dv), lambda i: (i, 0))),
        compiler_params=pltpu.CompilerParams(
            dimension_semantics=("parallel",)),
    )(x2d, w_qkv, bq, bk, bv)


# ----------- flash attention kernel with fused output projection ------------

def _flash_attn_kernel(q_ref, k_ref, v_ref, wo_ref, bo_ref, o_ref,
                       m_sc, l_sc, acc_sc, *, n_heads, d_k, d_v):
    ki = pl.program_id(2)

    @pl.when(ki == 0)
    def _init():
        m_sc[...] = jnp.full(m_sc.shape, -jnp.inf, jnp.float32)
        l_sc[...] = jnp.zeros(l_sc.shape, jnp.float32)
        acc_sc[...] = jnp.zeros(acc_sc.shape, jnp.float32)

    q_all = q_ref[0]          # (tq, H*E)  bf16; 1/sqrt(E) folded into W_q/b_q
    k_all = k_ref[0]          # (tk, H*E)  bf16
    v_all = v_ref[0]          # (tk, H*Dv) bf16

    # Read each scratch once (values), write each scratch once (lane-dense).
    m_prev = m_sc[...]        # (tq, H)    f32
    l_prev = l_sc[...]        # (tq, H)    f32
    acc_prev = acc_sc[...]    # (tq, H*Dv) f32

    m_cols, l_cols, acc_cols = [], [], []
    for h in range(n_heads):  # static unroll; each head's s/p fully consumed
        q_h = q_all[:, h * d_k:(h + 1) * d_k]
        k_h = k_all[:, h * d_k:(h + 1) * d_k]
        v_h = v_all[:, h * d_v:(h + 1) * d_v]

        # Q K^T without materializing a transpose: contract the last axes.
        s = lax.dot_general(q_h, k_h, (((1,), (1,)), ((), ())),
                            preferred_element_type=jnp.float32)     # (tq, tk)

        m_p = m_prev[:, h:h + 1]
        m_new = jnp.maximum(m_p, jnp.max(s, axis=-1, keepdims=True))
        alpha = jnp.exp(m_p - m_new)
        # TODO(synk): on v6e/v7x a bf16 exp (post max-subtraction) halves EUP
        # cost; kept f32 so v5e (no bf16 EUP/VPU path) doesn't pay conversions.
        p = jnp.exp(s - m_new)                                       # f32 stats
        pv = lax.dot_general(p.astype(jnp.bfloat16), v_h,
                             (((1,), (0,)), ((), ())),
                             preferred_element_type=jnp.float32)     # (tq, Dv)

        m_cols.append(m_new)
        l_cols.append(alpha * l_prev[:, h:h + 1]
                      + jnp.sum(p, axis=-1, keepdims=True))
        acc_cols.append(alpha * acc_prev[:, h * d_v:(h + 1) * d_v] + pv)

    # One lane-dense store per scratch per kv step (no per-head masked RMWs).
    m_sc[...] = jnp.concatenate(m_cols, axis=-1)
    l_sc[...] = jnp.concatenate(l_cols, axis=-1)
    acc_sc[...] = jnp.concatenate(acc_cols, axis=-1)

    @pl.when(ki == pl.num_programs(2) - 1)
    def _finalize():
        outs = []
        for h in range(n_heads):
            inv_l = pl.reciprocal(l_sc[:, h:h + 1], approx=True)    # EUP slot
            outs.append(acc_sc[:, h * d_v:(h + 1) * d_v] * inv_l)
        attn = jnp.concatenate(outs, axis=-1).astype(jnp.bfloat16)   # (tq,H*Dv)
        # Fused output projection: saves a pallas_call + a full HBM round trip
        # of the attention output.  Single lane-dense (tq, d_model) store.
        y = jnp.dot(attn, wo_ref[...], preferred_element_type=jnp.float32)
        o_ref[0] = (y + bo_ref[...]).astype(o_ref.dtype)


def flash_attention_out_proj(q, k, v, wo, bo, n_heads, *,
                             q_tile=256, kv_tile=512, out_dtype=jnp.float32):
    """q: (B, L, H*E), k: (B, S, H*E), v: (B, S, H*Dv), wo: (H*Dv, d_model)
    -> (B, L, d_model).  Heads stay packed along the lane axis (no HBM
    transposes); the kv axis is the trailing 'arbitrary' grid dim."""
    B, L, d_qk = q.shape
    _, S, d_vv = v.shape
    d_model = wo.shape[1]
    d_k = d_qk // n_heads
    d_v = d_vv // n_heads

    tq = _seq_tile(L, q_tile)        # v5e: prefer q_tile=128 (4x128 MXU)
    tk = _seq_tile(S, kv_tile)

    kernel = functools.partial(_flash_attn_kernel, n_heads=n_heads,
                               d_k=d_k, d_v=d_v)
    return pl.pallas_call(
        kernel,
        out_shape=jax.ShapeDtypeStruct((B, L, d_model), out_dtype),
        grid=(B, L // tq, S // tk),
        in_specs=[
            pl.BlockSpec((1, tq, d_qk), lambda b, qi, ki: (b, qi, 0)),
            pl.BlockSpec((1, tk, d_qk), lambda b, qi, ki: (b, ki, 0)),
            pl.BlockSpec((1, tk, d_vv), lambda b, qi, ki: (b, ki, 0)),
            pl.BlockSpec((d_vv, d_model), lambda b, qi, ki: (0, 0)),
            pl.BlockSpec((1, d_model), lambda b, qi, ki: (0, 0)),
        ],
        out_specs=pl.BlockSpec((1, tq, d_model), lambda b, qi, ki: (b, qi, 0)),
        scratch_shapes=[
            pltpu.VMEM((tq, n_heads), jnp.float32),   # running max   m
            pltpu.VMEM((tq, n_heads), jnp.float32),   # running sum   l
            pltpu.VMEM((tq, d_vv), jnp.float32),      # output accumulator
        ],
        compiler_params=pltpu.CompilerParams(
            dimension_semantics=("parallel", "parallel", "arbitrary")),
    )(q, k, v, wo, bo)


# ------------------------- parameter initialization ------------------------

def init_attention_layer(key, d_model, n_heads, d_keys=None, d_values=None):
    d_keys = d_keys or d_model // n_heads
    d_values = d_values or d_model // n_heads
    scale = 1.0 / math.sqrt(d_keys)          # FullAttention softmax scale

    def lin_init(kw, kb, fan_in, fan_out):
        # PyTorch nn.Linear default init: U(-1/sqrt(fan_in), +1/sqrt(fan_in)).
        bound = 1.0 / math.sqrt(fan_in)
        w = jax.random.uniform(kw, (fan_in, fan_out), jnp.float32, -bound, bound)
        b = jax.random.uniform(kb, (1, fan_out), jnp.float32, -bound, bound)
        return w, b

    ks = jax.random.split(key, 8)
    wq, bq = lin_init(ks[0], ks[1], d_model, d_keys * n_heads)
    wk, bk = lin_init(ks[2], ks[3], d_model, d_keys * n_heads)
    wv, bv = lin_init(ks[4], ks[5], d_model, d_values * n_heads)
    wo, bo = lin_init(ks[6], ks[7], d_values * n_heads, d_model)

    bf = lambda w: w.astype(jnp.bfloat16)    # MXU-native operand dtype
    wq_s = wq * scale                        # fold softmax scale into Q proj
    return {
        "n_heads": n_heads,
        # f32 master weights (unscaled) — reference semantics.
        "q": (wq, bq), "k": (wk, bk), "v": (wv, bv), "o": (wo, bo),
        # Kernel-side operands: bf16 weights; 1/sqrt(E) folded into W_q AND b_q
        # so the attention kernel never multiplies by the scale.
        "wq_s": bf(wq_s), "bq_s": bq * scale,
        "wk_b": bf(wk), "bk": bk,
        "wv_b": bf(wv), "bv": bv,
        "wo_b": bf(wo), "bo": bo,
        # Pre-concatenated W_q|W_k|W_v for the fused self-attention projection.
        "w_qkv": jnp.concatenate([bf(wq_s), bf(wk), bf(wv)], axis=1),
    }


# -------------------------------- forward ----------------------------------

def attention_layer_forward(params, queries, keys, values, attn_mask=None,
                            tau=None, delta=None, *, self_attention=False,
                            row_tile=512, q_tile=256, kv_tile=512):
    # TODO(synk): tau/delta belong to de-stationary attention; FullAttention
    # (mask_flag=False, output_attention=False) ignores them and returns
    # attn=None, matching the Transformer encoder usage of this layer.
    assert attn_mask is None, "FullAttention(mask_flag=False): no mask support"

    B, L, d_model = queries.shape
    _, S, _ = keys.shape
    H = params["n_heads"]
    d_qk = params["wq_s"].shape[1]          # H * d_keys
    d_vv = params["wv_b"].shape[1]          # H * d_values

    if self_attention:
        # Self-attention (encoder): fused QKV, activation read from HBM once.
        # (Static flag rather than `is`-identity, which breaks under jit/vmap.)
        q2d, k2d, v2d = fused_qkv(queries.reshape(B * L, d_model),
                                  params["w_qkv"], params["bq_s"],
                                  params["bk"], params["bv"],
                                  d_qk, d_qk, d_vv, row_tile=row_tile)
    else:
        q2d = linear(queries.reshape(B * L, d_model), params["wq_s"],
                     params["bq_s"], row_tile=row_tile)
        k2d = linear(keys.reshape(B * S, d_model), params["wk_b"],
                     params["bk"], row_tile=row_tile)
        v2d = linear(values.reshape(B * S, d_model), params["wv_b"],
                     params["bv"], row_tile=row_tile)

    # Heads stay packed along the last axis; these reshapes are free.
    q = q2d.reshape(B, L, d_qk)
    k = k2d.reshape(B, S, d_qk)
    v = v2d.reshape(B, S, d_vv)

    out = flash_attention_out_proj(q, k, v, params["wo_b"], params["bo"], H,
                                   q_tile=q_tile, kv_tile=kv_tile)
    return out, None


# ----------------------------- pure-JAX reference ---------------------------

def reference_forward(params, queries, keys, values):
    """f32 reference with PyTorch AttentionLayer + FullAttention semantics."""
    wq, bq = params["q"]
    wk, bk = params["k"]
    wv, bv = params["v"]
    wo, bo = params["o"]
    H = params["n_heads"]
    B, L, _ = queries.shape
    _, S, _ = keys.shape
    q = (queries @ wq + bq).reshape(B, L, H, -1)
    k = (keys @ wk + bk).reshape(B, S, H, -1)
    v = (values @ wv + bv).reshape(B, S, H, -1)
    E = q.shape[-1]
    scores = jnp.einsum("blhe,bshe->bhls", q, k) / math.sqrt(E)
    a = jax.nn.softmax(scores, axis=-1)
    out = jnp.einsum("bhls,bshd->blhd", a, v).reshape(B, L, -1)
    return out @ wo + bo


# --------------------------------- main -------------------------------------

if __name__ == "__main__":
    B, L, d_model, n_heads = 2, 32, 64, 4      # d_keys = d_values = 16
    S_cross = 16

    root = jax.random.PRNGKey(0)
    k_param, k_x, k_k, k_v = jax.random.split(root, 4)
    params = init_attention_layer(k_param, d_model, n_heads)

    # Small tiles so the demo exercises multi-tile row / q / kv grids
    # (production defaults: row_tile=512, q_tile=256, kv_tile=512).
    tiles = dict(row_tile=32, q_tile=16, kv_tile=16)

    # 1) self-attention (encoder path): fused QKV + fused output projection.
    x = jax.random.normal(k_x, (B, L, d_model), jnp.float32)
    out, attn = attention_layer_forward(params, x, x, x, None,
                                        self_attention=True, **tiles)
    out = jax.block_until_ready(out)
    assert out.shape == (B, L, d_model) and attn is None
    ref = reference_forward(params, x, x, x)
    err = float(jnp.max(jnp.abs(out - ref)))
    assert jnp.allclose(out, ref, atol=5e-2, rtol=5e-2), f"self-attn err={err}"

    # 2) cross-attention (L != S): separate tiled projections, same attention.
    keys_in = jax.random.normal(k_k, (B, S_cross, d_model), jnp.float32)
    vals_in = jax.random.normal(k_v, (B, S_cross, d_model), jnp.float32)
    out2, _ = attention_layer_forward(params, x, keys_in, vals_in, None,
                                      self_attention=False, **tiles)
    out2 = jax.block_until_ready(out2)
    assert out2.shape == (B, L, d_model)
    ref2 = reference_forward(params, x, keys_in, vals_in)
    err2 = float(jnp.max(jnp.abs(out2 - ref2)))
    assert jnp.allclose(out2, ref2, atol=5e-2, rtol=5e-2), f"cross-attn err={err2}"

    print("KERNEL_OK")
</pallas_src>

<mosaic_0001>
module attributes {stable_mosaic.version = 11 : i64} {
  func.func @_fused_qkv_kernel(%arg0: i32, %arg1: memref<32x64xf32, #tpu.memory_space<vmem>>, %arg2: memref<64x192xbf16, #tpu.memory_space<vmem>>, %arg3: memref<1x64xf32, #tpu.memory_space<vmem>>, %arg4: memref<1x64xf32, #tpu.memory_space<vmem>>, %arg5: memref<1x64xf32, #tpu.memory_space<vmem>>, %arg6: memref<32x64xbf16, #tpu.memory_space<vmem>>, %arg7: memref<32x64xbf16, #tpu.memory_space<vmem>>, %arg8: memref<32x64xbf16, #tpu.memory_space<vmem>>) attributes {dimension_semantics = [#tpu.dimension_semantics<parallel>], iteration_bounds = array<i64: 2>, scalar_prefetch = 0 : i64, scratch_operands = 0 : i64, tpu.core_type = #tpu.core_type<tc>, window_params = [{transform_indices = @transform_0, window_bounds = array<i64: 32, 64>}, {pipeline_mode = #tpu.pipeline_mode<synchronous>, transform_indices = @transform_1, window_bounds = array<i64: 64, 192>}, {pipeline_mode = #tpu.pipeline_mode<synchronous>, transform_indices = @transform_2, window_bounds = array<i64: 1, 64>}, {pipeline_mode = #tpu.pipeline_mode<synchronous>, transform_indices = @transform_3, window_bounds = array<i64: 1, 64>}, {pipeline_mode = #tpu.pipeline_mode<synchronous>, transform_indices = @transform_4, window_bounds = array<i64: 1, 64>}, {transform_indices = @transform_5, window_bounds = array<i64: 32, 64>}, {transform_indices = @transform_6, window_bounds = array<i64: 32, 64>}, {transform_indices = @transform_7, window_bounds = array<i64: 32, 64>}]} {
    %c0 = arith.constant 0 : index
    %c0_0 = arith.constant 0 : index
    %0 = vector.load %arg1[%c0, %c0_0] : memref<32x64xf32, #tpu.memory_space<vmem>>, vector<32x64xf32>
    %1 = arith.truncf %0 : vector<32x64xf32> to vector<32x64xbf16>
    %c0_1 = arith.constant 0 : index
    %c0_2 = arith.constant 0 : index
    %2 = vector.load %arg2[%c0_1, %c0_2] : memref<64x192xbf16, #tpu.memory_space<vmem>>, vector<64x192xbf16>
    %cst = arith.constant dense<0.000000e+00> : vector<32x192xf32>
    %3 = tpu.matmul %1, %2, %cst {dimension_numbers = #tpu.dot_dimension_numbers<[1], [0], [0], [1], [0, 0, 1, 1], [], []>} : vector<32x64xbf16>, vector<64x192xbf16>, vector<32x192xf32> -> vector<32x192xf32>
    %4 = vector.extract_strided_slice %3 {offsets = [0, 0], sizes = [32, 64], strides = [1, 1]} : vector<32x192xf32> to vector<32x64xf32>
    %c0_3 = arith.constant 0 : index
    %c0_4 = arith.constant 0 : index
    %5 = vector.load %arg3[%c0_3, %c0_4] : memref<1x64xf32, #tpu.memory_space<vmem>>, vector<1x64xf32>
    %6 = vector.broadcast %5 : vector<1x64xf32> to vector<32x64xf32>
    %7 = arith.addf %4, %6 : vector<32x64xf32>
    %8 = arith.truncf %7 : vector<32x64xf32> to vector<32x64xbf16>
    %c0_5 = arith.constant 0 : index
    %c0_6 = arith.constant 0 : index
    %9 = vector.load %arg6[%c0_5, %c0_6] : memref<32x64xbf16, #tpu.memory_space<vmem>>, vector<32x64xbf16>
    tpu.vector_store %arg6[%c0_5, %c0_6], %8 {strides = array<i32>} : memref<32x64xbf16, #tpu.memory_space<vmem>>, vector<32x64xbf16>,
    %10 = vector.extract_strided_slice %3 {offsets = [0, 64], sizes = [32, 64], strides = [1, 1]} : vector<32x192xf32> to vector<32x64xf32>
    %c0_7 = arith.constant 0 : index
    %c0_8 = arith.constant 0 : index
    %11 = vector.load %arg4[%c0_7, %c0_8] : memref<1x64xf32, #tpu.memory_space<vmem>>, vector<1x64xf32>
    %12 = vector.broadcast %11 : vector<1x64xf32> to vector<32x64xf32>
    %13 = arith.addf %10, %12 : vector<32x64xf32>
    %14 = arith.truncf %13 : vector<32x64xf32> to vector<32x64xbf16>
    %c0_9 = arith.constant 0 : index
    %c0_10 = arith.constant 0 : index
    %15 = vector.load %arg7[%c0_9, %c0_10] : memref<32x64xbf16, #tpu.memory_space<vmem>>, vector<32x64xbf16>
    tpu.vector_store %arg7[%c0_9, %c0_10], %14 {strides = array<i32>} : memref<32x64xbf16, #tpu.memory_space<vmem>>, vector<32x64xbf16>,
    %16 = vector.extract_strided_slice %3 {offsets = [0, 128], sizes = [32, 64], strides = [1, 1]} : vector<32x192xf32> to vector<32x64xf32>
    %c0_11 = arith.constant 0 : index
    %c0_12 = arith.constant 0 : index
    %17 = vector.load %arg5[%c0_11, %c0_12] : memref<1x64xf32, #tpu.memory_space<vmem>>, vector<1x64xf32>
    %18 = vector.broadcast %17 : vector<1x64xf32> to vector<32x64xf32>
    %19 = arith.addf %16, %18 : vector<32x64xf32>
    %20 = arith.truncf %19 : vector<32x64xf32> to vector<32x64xbf16>
    %c0_13 = arith.constant 0 : index
    %c0_14 = arith.constant 0 : index
    %21 = vector.load %arg8[%c0_13, %c0_14] : memref<32x64xbf16, #tpu.memory_space<vmem>>, vector<32x64xbf16>
    tpu.vector_store %arg8[%c0_13, %c0_14], %20 {strides = array<i32>} : memref<32x64xbf16, #tpu.memory_space<vmem>>, vector<32x64xbf16>,
    return
  }
  func.func @transform_0(%arg0: i32) -> (i32, i32) {
    %c0_i32 = arith.constant 0 : i32
    %c0_i32_0 = arith.constant 0 : i32
    return %arg0, %c0_i32 : i32, i32
  }
  func.func @transform_1(%arg0: i32) -> (i32, i32) {
    %c0_i32 = arith.constant 0 : i32
    %c0_i32_0 = arith.constant 0 : i32
    %c0_i32_1 = arith.constant 0 : i32
    return %c0_i32, %c0_i32_0 : i32, i32
  }
  func.func @transform_2(%arg0: i32) -> (i32, i32) {
    %c0_i32 = arith.constant 0 : i32
    %c0_i32_0 = arith.constant 0 : i32
    %c0_i32_1 = arith.constant 0 : i32
    return %c0_i32, %c0_i32_0 : i32, i32
  }
  func.func @transform_3(%arg0: i32) -> (i32, i32) {
    %c0_i32 = arith.constant 0 : i32
    %c0_i32_0 = arith.constant 0 : i32
    %c0_i32_1 = arith.constant 0 : i32
    return %c0_i32, %c0_i32_0 : i32, i32
  }
  func.func @transform_4(%arg0: i32) -> (i32, i32) {
    %c0_i32 = arith.constant 0 : i32
    %c0_i32_0 = arith.constant 0 : i32
    %c0_i32_1 = arith.constant 0 : i32
    return %c0_i32, %c0_i32_0 : i32, i32
  }
  func.func @transform_5(%arg0: i32) -> (i32, i32) {
    %c0_i32 = arith.constant 0 : i32
    %c0_i32_0 = arith.constant 0 : i32
    return %arg0, %c0_i32 : i32, i32
  }
  func.func @transform_6(%arg0: i32) -> (i32, i32) {
    %c0_i32 = arith.constant 0 : i32
    %c0_i32_0 = arith.constant 0 : i32
    return %arg0, %c0_i32 : i32, i32
  }
  func.func @transform_7(%arg0: i32) -> (i32, i32) {
    %c0_i32 = arith.constant 0 : i32
    %c0_i32_0 = arith.constant 0 : i32
    return %arg0, %c0_i32 : i32, i32
  }
}

</mosaic_0001>

<llo_original>
// kernel: tpu_custom_call.1
$region0: #{tpu_custom_call.1}
  #allocation0 [shape = 'u32[]', space=smem, size = 0x4, offset = 0x4, fixed_abs, tag = 'smem constant byte address 0x4 - core index']
  #allocation1 [shape = 'u32[144,128]{1,0:T(1,128)}', space=vmem, size = 0x12000, scoped, tag = 'internal scratch']
  %s0 = inlined_call_operand.hbm [shape: f32[64,64], index: 0, kind: input, shape index: {}]
  %s1 = inlined_call_operand.hbm [shape: bf16[64,192], index: 1, kind: input, shape index: {}]
  %s2 = inlined_call_operand.vmem [shape: f32[1,64], index: 2, kind: input, shape index: {}]
  %s3 = inlined_call_operand.vmem [shape: f32[1,64], index: 3, kind: input, shape index: {}]
  %s4 = inlined_call_operand.vmem [shape: f32[1,64], index: 4, kind: input, shape index: {}]
  %s5 = inlined_call_operand.hbm [shape: bf16[64,64], index: 5, kind: output, shape index: {0}]
  %s6 = inlined_call_operand.hbm [shape: bf16[64,64], index: 6, kind: output, shape index: {1}]
  %s7 = inlined_call_operand.hbm [shape: bf16[64,64], index: 7, kind: output, shape index: {2}]
  %8 = xla_tuple %s5, %s6, %s7
  %s9 = sld [smem:[#allocation0]]
  $region77: #{tpu_custom_call.1} parent=0
    _
  %s11 = ssub.s32 1, %s9
  %s12 = scalar_select 0, %s11, %s9
  $region1: #{tpu_custom_call.1} parent=0
    #allocation2 [shape = 'u8[32768]{0}', space=vmem, size = 0x8000, scoped, tag = 'input window, operand 0']
    #allocation3 [shape = 's32[2]{0}', space=sflag, size = 0x8, scoped, tag = 'scoped memory for tpu_custom_call.1']
    #allocation4 [shape = 's32[2]{0}', space=sflag, size = 0x8, scoped, tag = 'scoped memory for tpu_custom_call.1']
    #allocation5 [shape = 'u8[32768]{0}', space=vmem, size = 0x8000, scoped, tag = 'input window, operand 1, single buffered']
    #allocation6 [shape = 's32[1]{0}', space=sflag, size = 0x4, scoped, tag = 'scoped memory for tpu_custom_call.1']
    #allocation7 [shape = 'u8[16384]{0}', space=vmem, size = 0x4000, scoped, tag = 'output window, operand 0']
    #allocation8 [shape = 'u8[16384]{0}', space=vmem, size = 0x4000, scoped, tag = 'output window, operand 1']
    #allocation9 [shape = 's32[2]{0}', space=sflag, size = 0x8, scoped, tag = 'scoped memory for tpu_custom_call.1']
    #allocation10 [shape = 'u8[16384]{0}', space=vmem, size = 0x4000, scoped, tag = 'output window, operand 2']
    %13 = vsyncpa [#allocation3], 0
    %s14 = scalar_lea.sflag [#allocation3], 1
    %15 = vsyncpa %s14, 0
    %16 = vsyncpa [#allocation6], 0
    %17 = vsyncpa [#allocation4], 0
    %s18 = scalar_lea.sflag [#allocation4], 1
    %19 = vsyncpa %s18, 0
    %20 = vsyncpa [#allocation9], 0
    %s21 = scalar_lea.sflag [#allocation9], 1
    %22 = vsyncpa %s21, 0
    loop: start=0, step=1, limit=4
    $region2: #{tpu_custom_call.1} parent=1 // loop_pre_header
      _
    $region3: #{tpu_custom_call.1} parent=1 // loop_header
      %s24 = sphi 0, %s28
      %p25 = scmp.ge.s32.totalorder %s24, 4
      %s34 = sphi 0, %s36
      %s37 = sphi 0, %s34
      %s38 = sphi 0, %s37
      %s54 = sphi 0, %s38
      %s58 = sphi 0, %s58
      %s60 = sphi 0, %s58
      %s61 = sphi 0, %s60
      %s75 = sphi 0, %s61
      %s79 = sphi 0, %s79
      %s81 = sphi 0, %s79
      %s82 = sphi 0, %s81
      %s96 = sphi 0, %s82
      %s100 = sphi 0, %s100
      %s102 = sphi 0, %s100
      %s103 = sphi 0, %s102
      %s117 = sphi 0, %s103
      %s121 = sphi 0, %s121
      %s123 = sphi 0, %s121
      %s124 = sphi 0, %s123
      %s138 = sphi 0, %s124
      %s144 = sphi 0, %s146
      %s147 = sphi 0, %s144
      %s148 = sphi 0, %s147
      %s164 = sphi 0, %s148
      %s170 = sphi 0, %s172
      %s173 = sphi 0, %s170
      %s174 = sphi 0, %s173
      %s190 = sphi 0, %s174
      %s196 = sphi 0, %s198
      %s199 = sphi 0, %s196
      %s200 = sphi 0, %s199
      %s216 = sphi 0, %s200
    $region4: #{tpu_custom_call.1} parent=1 // loop_header_branch
      %27 = sbr.rel (%p25) target = $region8
    $region5: #{tpu_custom_call.1} parent=1 // loop_body
      %s29 = ssub.s32 %s24, 1
      %s30 = ssub.s32 %s24, 2
      %s31 = sadd.s32 %s24, 1
      %s32 = ssub.s32 %s24, %s31
      %p33 = scmp.eq.s32.totalorder %s32, 0
      %s35 = sadd.s32 %s34, 1
      %s36 = scalar_select %p33, %s34, %s35
      %p39 = pneg %p33
      %p40 = scmp.eq.s32.totalorder %s24, 1
      %p41 = por %p39, %p40
      %p42 = scmp.ne.s32.totalorder %s34, %s37
      %p43 = scmp.eq.s32.totalorder %s24, 0
      %p44 = por %p42, %p43
      %p45 = scmp.ne.s32.totalorder %s34, %s37
      %p46 = scmp.eq.s32.totalorder %s29, 1
      %p47 = por %p45, %p46
      %p48 = scmp.ne.s32.totalorder %s37, %s38
      %p49 = scmp.eq.s32.totalorder %s29, 0
      %p50 = por %p48, %p49
      %p51 = scmp.ne.s32.totalorder %s37, %s38
      %p52 = scmp.eq.s32.totalorder %s30, 1
      %p53 = por %p51, %p52
      %p55 = scmp.ne.s32.totalorder %s38, %s54
      %p56 = scmp.eq.s32.totalorder %s30, 0
      %p57 = por %p55, %p56
      %s59 = sadd.s32 %s58, 1
      %p62 = scmp.eq.s32.totalorder %s24, 1
      %p63 = scmp.ne.s32.totalorder %s58, %s60
      %p64 = scmp.eq.s32.totalorder %s24, 0
      %p65 = por %p63, %p64
      %p66 = scmp.ne.s32.totalorder %s58, %s60
      %p67 = scmp.eq.s32.totalorder %s29, 1
      %p68 = por %p66, %p67
      %p69 = scmp.ne.s32.totalorder %s60, %s61
      %p70 = scmp.eq.s32.totalorder %s29, 0
      %p71 = por %p69, %p70
      %p72 = scmp.ne.s32.totalorder %s60, %s61
      %p73 = scmp.eq.s32.totalorder %s30, 1
      %p74 = por %p72, %p73
      %p76 = scmp.ne.s32.totalorder %s61, %s75
      %p77 = scmp.eq.s32.totalorder %s30, 0
      %p78 = por %p76, %p77
      %s80 = sadd.s32 %s79, 1
      %p83 = scmp.eq.s32.totalorder %s24, 1
      %p84 = scmp.ne.s32.totalorder %s79, %s81
      %p85 = scmp.eq.s32.totalorder %s24, 0
      %p86 = por %p84, %p85
      %p87 = scmp.ne.s32.totalorder %s79, %s81
      %p88 = scmp.eq.s32.totalorder %s29, 1
      %p89 = por %p87, %p88
      %p90 = scmp.ne.s32.totalorder %s81, %s82
      %p91 = scmp.eq.s32.totalorder %s29, 0
      %p92 = por %p90, %p91
      %p93 = scmp.ne.s32.totalorder %s81, %s82
      %p94 = scmp.eq.s32.totalorder %s30, 1
      %p95 = por %p93, %p94
      %p97 = scmp.ne.s32.totalorder %s82, %s96
      %p98 = scmp.eq.s32.totalorder %s30, 0
      %p99 = por %p97, %p98
      %s101 = sadd.s32 %s100, 1
      %p104 = scmp.eq.s32.totalorder %s24, 1
      %p105 = scmp.ne.s32.totalorder %s100, %s102
      %p106 = scmp.eq.s32.totalorder %s24, 0
      %p107 = por %p105, %p106
      %p108 = scmp.ne.s32.totalorder %s100, %s102
      %p109 = scmp.eq.s32.totalorder %s29, 1
      %p110 = por %p108, %p109
      %p111 = scmp.ne.s32.totalorder %s102, %s103
      %p112 = scmp.eq.s32.totalorder %s29, 0
      %p113 = por %p111, %p112
      %p114 = scmp.ne.s32.totalorder %s102, %s103
      %p115 = scmp.eq.s32.totalorder %s30, 1
      %p116 = por %p114, %p115
      %p118 = scmp.ne.s32.totalorder %s103, %s117
      %p119 = scmp.eq.s32.totalorder %s30, 0
      %p120 = por %p118, %p119
      %s122 = sadd.s32 %s121, 1
      %p125 = scmp.eq.s32.totalorder %s24, 1
      %p126 = scmp.ne.s32.totalorder %s121, %s123
      %p127 = scmp.eq.s32.totalorder %s24, 0
      %p128 = por %p126, %p127
      %p129 = scmp.ne.s32.totalorder %s121, %s123
      %p130 = scmp.eq.s32.totalorder %s29, 1
      %p131 = por %p129, %p130
      %p132 = scmp.ne.s32.totalorder %s123, %s124
      %p133 = scmp.eq.s32.totalorder %s29, 0
      %p134 = por %p132, %p133
      %p135 = scmp.ne.s32.totalorder %s123, %s124
      %p136 = scmp.eq.s32.totalorder %s30, 1
      %p137 = por %p135, %p136
      %p139 = scmp.ne.s32.totalorder %s124, %s138
      %p140 = scmp.eq.s32.totalorder %s30, 0
      %p141 = por %p139, %p140
      %s142 = ssub.s32 %s24, %s31
      %p143 = scmp.eq.s32.totalorder %s142, 0
      %s145 = sadd.s32 %s144, 1
      %s146 = scalar_select %p143, %s144, %s145
      %p149 = pneg %p143
      %p150 = scmp.eq.s32.totalorder %s24, 1
      %p151 = por %p149, %p150
      %p152 = scmp.ne.s32.totalorder %s144, %s147
      %p153 = scmp.eq.s32.totalorder %s24, 0
      %p154 = por %p152, %p153
      %p155 = scmp.ne.s32.totalorder %s144, %s147
      %p156 = scmp.eq.s32.totalorder %s29, 1
      %p157 = por %p155, %p156
      %p158 = scmp.ne.s32.totalorder %s147, %s148
      %p159 = scmp.eq.s32.totalorder %s29, 0
      %p160 = por %p158, %p159
      %p161 = scmp.ne.s32.totalorder %s147, %s148
      %p162 = scmp.eq.s32.totalorder %s30, 1
      %p163 = por %p161, %p162
      %p165 = scmp.ne.s32.totalorder %s148, %s164
      %p166 = scmp.eq.s32.totalorder %s30, 0
      %p167 = por %p165, %p166
      %s168 = ssub.s32 %s24, %s31
      %p169 = scmp.eq.s32.totalorder %s168, 0
      %s171 = sadd.s32 %s170, 1
      %s172 = scalar_select %p169, %s170, %s171
      %p175 = pneg %p169
      %p176 = scmp.eq.s32.totalorder %s24, 1
      %p177 = por %p175, %p176
      %p178 = scmp.ne.s32.totalorder %s170, %s173
      %p179 = scmp.eq.s32.totalorder %s24, 0
      %p180 = por %p178, %p179
      %p181 = scmp.ne.s32.totalorder %s170, %s173
      %p182 = scmp.eq.s32.totalorder %s29, 1
      %p183 = por %p181, %p182
      %p184 = scmp.ne.s32.totalorder %s173, %s174
      %p185 = scmp.eq.s32.totalorder %s29, 0
      %p186 = por %p184, %p185
      %p187 = scmp.ne.s32.totalorder %s173, %s174
      %p188 = scmp.eq.s32.totalorder %s30, 1
      %p189 = por %p187, %p188
      %p191 = scmp.ne.s32.totalorder %s174, %s190
      %p192 = scmp.eq.s32.totalorder %s30, 0
      %p193 = por %p191, %p192
      %s194 = ssub.s32 %s24, %s31
      %p195 = scmp.eq.s32.totalorder %s194, 0
      %s197 = sadd.s32 %s196, 1
      %s198 = scalar_select %p195, %s196, %s197
      %p201 = pneg %p195
      %p202 = scmp.eq.s32.totalorder %s24, 1
      %p203 = por %p201, %p202
      %p204 = scmp.ne.s32.totalorder %s196, %s199
      %p205 = scmp.eq.s32.totalorder %s24, 0
      %p206 = por %p204, %p205
      %p207 = scmp.ne.s32.totalorder %s196, %s199
      %p208 = scmp.eq.s32.totalorder %s29, 1
      %p209 = por %p207, %p208
      %p210 = scmp.ne.s32.totalorder %s199, %s200
      %p211 = scmp.eq.s32.totalorder %s29, 0
      %p212 = por %p210, %p211
      %p213 = scmp.ne.s32.totalorder %s199, %s200
      %p214 = scmp.eq.s32.totalorder %s30, 1
      %p215 = por %p213, %p214
      %p217 = scmp.ne.s32.totalorder %s200, %s216
      %p218 = scmp.eq.s32.totalorder %s30, 0
      %p219 = por %p217, %p218
      %p220 = scmp.le.s32.totalorder 1, %s24
      %p221 = scmp.lt.s32.totalorder %s24, 3
      %p222 = pnand %p220, %p221
      %p223 = pneg %p222
      // Predicated region
      $region9: #{tpu_custom_call.1} parent=5 // pred_check
        _
      $region10: #{tpu_custom_call.1} parent=5 // pred_check_branch
        %225 = sbr.rel (%p222) target = $region12
      $region11: #{tpu_custom_call.1} parent=5 // pred_region
        %s226 = ssub.s32 %s24, 1
        // Predicated region
        $region13: #{tpu_custom_call.1} parent=11 // pred_check
          %p227 = pneg %p71
        $region14: #{tpu_custom_call.1} parent=11 // pred_check_branch
          %229 = sbr.rel (%p227) target = $region16
        $region15: #{tpu_custom_call.1} parent=11 // pred_region
          %s231 = ssub.s32 1024, 1024
          %232 = vsyncadd [#allocation6], %s231
          %s233 = sshll.u32 [#allocation5], 4
          %s234 = int_to_ptr.vmem [resolvable:$true] %s233
          %239 = dma.hbm_to_vmem [thread:$0]  %s1, 1024, %s234, [#allocation6], 128, 128, 8
        $region16: #{tpu_custom_call.1} parent=11 // pred_fallthru
          _
        // Predicated region
        $region17: #{tpu_custom_call.1} parent=11 // pred_check
          %p240 = pneg %p92
        $region18: #{tpu_custom_call.1} parent=11 // pred_check_branch
          %242 = sbr.rel (%p240) target = $region20
        $region19: #{tpu_custom_call.1} parent=11 // pred_region
          _
        $region20: #{tpu_custom_call.1} parent=11 // pred_fallthru
          _
        // Predicated region
        $region21: #{tpu_custom_call.1} parent=11 // pred_check
          %p243 = pneg %p113
        $region22: #{tpu_custom_call.1} parent=11 // pred_check_branch
          %245 = sbr.rel (%p243) target = $region24
        $region23: #{tpu_custom_call.1} parent=11 // pred_region
          _
        $region24: #{tpu_custom_call.1} parent=11 // pred_fallthru
          _
        // Predicated region
        $region25: #{tpu_custom_call.1} parent=11 // pred_check
          %p246 = pneg %p134
        $region26: #{tpu_custom_call.1} parent=11 // pred_check_branch
          %248 = sbr.rel (%p246) target = $region28
        $region27: #{tpu_custom_call.1} parent=11 // pred_region
          _
        $region28: #{tpu_custom_call.1} parent=11 // pred_fallthru
          _
      $region12: #{tpu_custom_call.1} parent=5 // pred_fallthru
        _
      %p249 = scmp.lt.s32.totalorder %s24, 2
      // Predicated region
      $region29: #{tpu_custom_call.1} parent=5 // pred_check
        %p250 = pneg %p249
      $region30: #{tpu_custom_call.1} parent=5 // pred_check_branch
        %252 = sbr.rel (%p250) target = $region32
      $region31: #{tpu_custom_call.1} parent=5 // pred_region
        // Predicated region
        $region33: #{tpu_custom_call.1} parent=31 // pred_check
          %p253 = pneg %p44
        $region34: #{tpu_custom_call.1} parent=31 // pred_check_branch
          %255 = sbr.rel (%p253) target = $region36
        $region35: #{tpu_custom_call.1} parent=31 // pred_region
          %s256 = sand.u32 %s34, 1
          %s257 = scalar_lea.sflag [#allocation3], %s256
          %s258 = sand.u32 %s34, 1
          %s259 = smul.addr %s258, 32
          %s260 = scalar_lea.vmem [#allocation2], %s259
          %s261 = smul.u32 4, %s24
          %s263 = ssub.s32 512, 512
          %264 = vsyncadd %s257, %s263
          %s265 = smul.addr %s261, 128
          %s266 = scalar_lea.hbm %s0, %s265
          %s267 = sshll.u32 %s260, 4
          %s268 = int_to_ptr.vmem [resolvable:$true] %s267
          %273 = dma.hbm_to_vmem [thread:$0]  %s266, 512, %s268, %s257, 128, 128, 8
        $region36: #{tpu_custom_call.1} parent=31 // pred_fallthru
          _
      $region32: #{tpu_custom_call.1} parent=5 // pred_fallthru
        _
      %p274 = scmp.le.s32.totalorder 1, %s24
      %p275 = scmp.lt.s32.totalorder %s24, 3
      %p276 = pnand %p274, %p275
      %p277 = pneg %p276
      // Predicated region
      $region37: #{tpu_custom_call.1} parent=5 // pred_check
        _
      $region38: #{tpu_custom_call.1} parent=5 // pred_check_branch
        %279 = sbr.rel (%p276) target = $region40
      $region39: #{tpu_custom_call.1} parent=5 // pred_region
        %s280 = ssub.s32 %s24, 1
        %s281 = sand.u32 %s37, 1
        %s282 = scalar_lea.sflag [#allocation3], %s281
        %s283 = sand.u32 %s37, 1
        %s284 = smul.addr %s283, 32
        %s285 = scalar_lea.vmem [#allocation2], %s284
        // Predicated region
        $region41: #{tpu_custom_call.1} parent=39 // pred_check
          %p286 = pneg %p50
        $region42: #{tpu_custom_call.1} parent=39 // pred_check_branch
          %288 = sbr.rel (%p286) target = $region44
        $region43: #{tpu_custom_call.1} parent=39 // pred_region
          %289 = dma.done %s282, 512
        $region44: #{tpu_custom_call.1} parent=39 // pred_fallthru
          _
        // Predicated region
        $region45: #{tpu_custom_call.1} parent=39 // pred_check
          %p290 = pneg %p71
        $region46: #{tpu_custom_call.1} parent=39 // pred_check_branch
          %292 = sbr.rel (%p290) target = $region48
        $region47: #{tpu_custom_call.1} parent=39 // pred_region
          %293 = dma.done [#allocation6], 1024
        $region48: #{tpu_custom_call.1} parent=39 // pred_fallthru
          _
        %s294 = sand.u32 %s37, 1
        %s295 = scalar_lea.sflag [#allocation3], %s294
        %s296 = sand.u32 %s37, 1
        %s297 = smul.addr %s296, 32
        %s298 = scalar_lea.vmem [#allocation2], %s297
        %p299 = pneg %p50
        %p300 = pneg %p47
        %p301 = pneg %p71
        %p302 = pneg %p68
        %p303 = pneg %p92
        %p304 = pneg %p89
        %p305 = pneg %p113
        %p306 = pneg %p110
        %p307 = pneg %p134
        %p308 = pneg %p131
        %p309 = pneg %p160
        %p310 = pneg %p157
        %s311 = sand.u32 %s147, 1
        %s312 = scalar_lea.sflag [#allocation4], %s311
        %s313 = sand.u32 %s147, 1
        %s314 = smul.addr %s313, 16
        %s315 = scalar_lea.vmem [#allocation7], %s314
        %p316 = pneg %p186
        %p317 = pneg %p183
        %s318 = sand.u32 %s29, 1
        %s319 = scalar_lea.sflag [#allocation9], %s318
        %s320 = sand.u32 %s173, 1
        %s321 = smul.addr %s320, 16
        %s322 = scalar_lea.vmem [#allocation8], %s321
        %p323 = pneg %p212
        %p324 = pneg %p209
        %s325 = sand.u32 %s29, 1
        %s326 = scalar_lea.sflag [#allocation9], %s325
        %s327 = sand.u32 %s199, 1
        %s328 = smul.addr %s327, 16
        %s329 = scalar_lea.vmem [#allocation10], %s328
        %s330 = smul.u32 4, %s29
        %s331 = smul.u32 4, %s29
        %s332 = smul.u32 4, %s29
        %s333 = smul.u32 4, %s29
        %v335 = vld [vmem:[%s285] sm:$0xff]
        %v336 = vld [vmem:[%s285 + $0x8] sm:$0xff]
        %v337 = vld [vmem:[%s285 + $0x10] sm:$0xff]
        %v338 = vld [vmem:[%s285 + $0x18] sm:$0xff]
        %v339 = vpack.c.bf16 %v336, %v335
        %v340 = vpack.c.bf16 %v338, %v337
        %v341 = vld [vmem:[#allocation5] sm:$0xff]
        %v342 = vld [vmem:[#allocation5 + $0x8] sm:$0xff]
        %v343 = vld [vmem:[#allocation5 + $0x10] sm:$0xff]
        %v344 = vld [vmem:[#allocation5 + $0x18] sm:$0xff]
        %v345 = vld [vmem:[#allocation5 + $0x20] sm:$0xff]
        %v346 = vld [vmem:[#allocation5 + $0x28] sm:$0xff]
        %v347 = vld [vmem:[#allocation5 + $0x30] sm:$0xff]
        %v348 = vld [vmem:[#allocation5 + $0x38] sm:$0xff]
        %v357 = vunpack.c.l.b16 %v341
        %v358 = vunpack.c.h.b16 %v341
        %v359 = vunpack.c.l.b16 %v342
        %v360 = vunpack.c.h.b16 %v342
        %v361 = vunpack.c.l.b16 %v343
        %v362 = vunpack.c.h.b16 %v343
        %v363 = vunpack.c.l.b16 %v344
        %v364 = vunpack.c.h.b16 %v344
        %v365 = vunpack.c.l.b16 %v345
        %v366 = vunpack.c.h.b16 %v345
        %v367 = vunpack.c.l.b16 %v346
        %v368 = vunpack.c.h.b16 %v346
        %v369 = vunpack.c.l.b16 %v347
        %v370 = vunpack.c.h.b16 %v347
        %v371 = vunpack.c.l.b16 %v348
        %v372 = vunpack.c.h.b16 %v348
        %v373 = vpack.c.b16 %v359, %v357
        %v374 = vpack.c.b16 %v360, %v358
        %v375 = vpack.c.b16 %v363, %v361
        %v376 = vpack.c.b16 %v364, %v362
        %v377 = vpack.c.b16 %v367, %v365
        %v378 = vpack.c.b16 %v368, %v366
        %v379 = vpack.c.b16 %v371, %v369
        %v380 = vpack.c.b16 %v372, %v370
        %vm389 = vcmask 523264
        %v391 = vsel %vm389, %v339, 0
        %v394 = vsel %vm389, %v340, 0
        %396 = vmatprep.subr.bf16.mxu0 0
        %397 = vmatpush1.bf16.msra.mxu0 0
        %398 = vmatprep.subr.bf16.mxu0 0
        %399 = vmatpush1.bf16.msra.mxu0 0
        %400 = vmatprep.subr.bf16.mxu0 0
        %401 = vmatpush1.bf16.msra.mxu0 0
        %402 = vmatprep.subr.bf16.mxu0 0
        %403 = vmatpush1.bf16.msra.mxu0 0
        %404 = vmatprep.subr.bf16.mxu0 %v380
        %405 = vmatpush1.bf16.msra.mxu0 %v379
        %406 = vmatprep.subr.bf16.mxu0 %v378
        %407 = vmatpush1.bf16.msra.mxu0 %v377
        %408 = vmatprep.subr.bf16.mxu0 %v376
        %409 = vmatpush1.bf16.msra.mxu0 %v375
        %410 = vmatprep.subr.bf16.mxu0 %v374
        %411 = vmatpush1.bf16.msra.mxu0 %v373
        %412 = vmatprep.subr.bf16.mxu0 0
        %413 = vmatpush2.bf16.msra.mxu0 0
        %414 = vmatprep.subr.bf16.mxu0 0
        %415 = vmatpush2.bf16.msra.mxu0 0
        %416 = vmatprep.subr.bf16.mxu0 0
        %417 = vmatpush2.bf16.msra.mxu0 0
        %418 = vmatprep.subr.bf16.mxu0 0
        %419 = vmatpush2.bf16.msra.mxu0 0
        %420 = vmatprep.subr.bf16.mxu0 0
        %421 = vmatpush2.bf16.msra.mxu0 0
        %422 = vmatprep.subr.bf16.mxu0 0
        %423 = vmatpush2.bf16.msra.mxu0 0
        %424 = vmatprep.subr.bf16.mxu0 0
        %425 = vmatpush2.bf16.msra.mxu0 0
        %426 = vmatprep.subr.bf16.mxu0 0
        %427 = vmatpush2.bf16.msra.mxu0 0
        %428 = vmatprep.mubr.bf16.mxu0 0
        %429 = vmatmul.mubr.bf16.gmra.mxu0 %v391
        %v430 = vpop.f32.mrf.mxu0
        %v431 = vadd.f32 0.0, %v430
        %v432 = vpop.f32.mrf.mxu0
        %v433 = vadd.f32 0.0, %v432
        %v434 = vpop.f32.mrf.mxu0
        %v435 = vadd.f32 0.0, %v434
        %v436 = vpop.f32.mrf.mxu0
        %v437 = vadd.f32 0.0, %v436
        %438 = vmatprep.mubr.bf16.mxu0 0
        %439 = vmatmul.mubr.bf16.gmra.mxu0 %v394
        %v440 = vpop.f32.mrf.mxu0
        %v441 = vadd.f32 0.0, %v440
        %v442 = vpop.f32.mrf.mxu0
        %v443 = vadd.f32 0.0, %v442
        %v444 = vpop.f32.mrf.mxu0
        %v445 = vadd.f32 0.0, %v444
        %v446 = vpop.f32.mrf.mxu0
        %v447 = vadd.f32 0.0, %v446
        %448 = vdwg.mxu0
        %v449 = vld [vmem:[%s2] sm:$0x1]
        %v451 = vlaneseq
        %v452 = vshrl.u32 %v451, 7
        %v453 = vsub.s32 0, %v452
        %v454 = vrot.slane %v449, %v453
        %v456 = vadd.f32 %v431, %v454
        %v457 = vadd.f32 %v435, %v454
        %v458 = vadd.f32 %v441, %v454
        %v459 = vadd.f32 %v445, %v454
        %v460 = vpack.c.bf16 %v457, %v456
        %v461 = vpack.c.bf16 %v459, %v458
        %v464 = vunpack.c.l.b16 %v460
        %v465 = vunpack.c.h.b16 %v460
        %v466 = vunpack.c.l.b16 %v461
        %v467 = vunpack.c.h.b16 %v461
        %v468 = vpack.c.b16 %v464, %v464
        %v469 = vpack.c.b16 %v465, %v465
        %v470 = vpack.c.b16 %v466, %v466
        %v471 = vpack.c.b16 %v467, %v467
        %vm476 = vcmask 519168
        %477 = vst.msk [vmem:[%s315] sm:$0xf] %vm476, %v468
        %478 = vst.msk [vmem:[%s315 + $0x4] sm:$0xf] %vm476, %v469
        %479 = vst.msk [vmem:[%s315 + $0x8] sm:$0xf] %vm476, %v470
        %480 = vst.msk [vmem:[%s315 + $0xc] sm:$0xf] %vm476, %v471
        %v481 = vld [vmem:[%s3] sm:$0x1]
        %v483 = vlaneseq
        %v484 = vshrl.u32 %v483, 7
        %v485 = vsub.s32 0, %v484
        %v486 = vrot.slane %v481, %v485
        %487 = vrot.lane.b32.xlu0 %v486, 64
        %v488 = vpop.permute.xlu0 %487
        %v490 = vadd.f32 %v431, %v488
        %v491 = vadd.f32 %v435, %v488
        %v492 = vadd.f32 %v441, %v488
        %v493 = vadd.f32 %v445, %v488
        %v494 = vpack.c.bf16 %v491, %v490
        %v495 = vpack.c.bf16 %v493, %v492
        %v498 = vunpack.c.l.b16 %v494
        %v499 = vunpack.c.h.b16 %v494
        %v500 = vunpack.c.l.b16 %v495
        %v501 = vunpack.c.h.b16 %v495
        %v502 = vpack.c.b16 %v498, %v498
        %v503 = vpack.c.b16 %v499, %v499
        %v504 = vpack.c.b16 %v500, %v500
        %v505 = vpack.c.b16 %v501, %v501
        %506 = vrot.lane.b32.xlu0 %v502, 64
        %v507 = vpop.permute.xlu0 %506
        %508 = vrot.lane.b32.xlu0 %v503, 64
        %v509 = vpop.permute.xlu0 %508
        %510 = vrot.lane.b32.xlu0 %v504, 64
        %v511 = vpop.permute.xlu0 %510
        %512 = vrot.lane.b32.xlu0 %v505, 64
        %v513 = vpop.permute.xlu0 %512
        %518 = vst.msk [vmem:[%s322] sm:$0xf] %vm476, %v507
        %519 = vst.msk [vmem:[%s322 + $0x4] sm:$0xf] %vm476, %v509
        %520 = vst.msk [vmem:[%s322 + $0x8] sm:$0xf] %vm476, %v511
        %521 = vst.msk [vmem:[%s322 + $0xc] sm:$0xf] %vm476, %v513
        %v522 = vld [vmem:[%s4] sm:$0x1]
        %v524 = vlaneseq
        %v525 = vshrl.u32 %v524, 7
        %v526 = vsub.s32 0, %v525
        %v527 = vrot.slane %v522, %v526
        %v529 = vadd.f32 %v433, %v527
        %v530 = vadd.f32 %v437, %v527
        %v531 = vadd.f32 %v443, %v527
        %v532 = vadd.f32 %v447, %v527
        %v533 = vpack.c.bf16 %v530, %v529
        %v534 = vpack.c.bf16 %v532, %v531
        %v537 = vunpack.c.l.b16 %v533
        %v538 = vunpack.c.h.b16 %v533
        %v539 = vunpack.c.l.b16 %v534
        %v540 = vunpack.c.h.b16 %v534
        %v541 = vpack.c.b16 %v537, %v537
        %v542 = vpack.c.b16 %v538, %v538
        %v543 = vpack.c.b16 %v539, %v539
        %v544 = vpack.c.b16 %v540, %v540
        %549 = vst.msk [vmem:[%s329] sm:$0xf] %vm476, %v541
        %550 = vst.msk [vmem:[%s329 + $0x4] sm:$0xf] %vm476, %v542
        %551 = vst.msk [vmem:[%s329 + $0x8] sm:$0xf] %vm476, %v543
        %552 = vst.msk [vmem:[%s329 + $0xc] sm:$0xf] %vm476, %v544
        %s553 = sand.u32 %s147, 1
        %s554 = scalar_lea.sflag [#allocation4], %s553
        %s555 = sand.u32 %s147, 1
        %s556 = smul.addr %s555, 16
        %s557 = scalar_lea.vmem [#allocation7], %s556
        %s558 = sand.u32 %s29, 1
        %s559 = scalar_lea.sflag [#allocation9], %s558
        %s560 = sand.u32 %s173, 1
        %s561 = smul.addr %s560, 16
        %s562 = scalar_lea.vmem [#allocation8], %s561
        %s563 = sand.u32 %s29, 1
        %s564 = scalar_lea.sflag [#allocation9], %s563
        %s565 = sand.u32 %s199, 1
        %s566 = smul.addr %s565, 16
        %s567 = scalar_lea.vmem [#allocation10], %s566
        // Predicated region
        $region49: #{tpu_custom_call.1} parent=39 // pred_check
          %p568 = pneg %p157
        $region50: #{tpu_custom_call.1} parent=39 // pred_check_branch
          %570 = sbr.rel (%p568) target = $region52
        $region51: #{tpu_custom_call.1} parent=39 // pred_region
          %s571 = smul.u32 4, %s29
          %s573 = ssub.s32 256, 256
          %574 = vsyncadd %s554, %s573
          %s575 = smul.addr %s571, 64
          %s576 = scalar_lea.hbm %s5, %s575
          %s577 = sshll.u32 %s557, 4
          %s578 = int_to_ptr.vmem [resolvable:$true] %s577
          %583 = dma.vmem_to_hbm [thread:$0]  %s578, 256, %s576, %s554, 64, 64, 4
        $region52: #{tpu_custom_call.1} parent=39 // pred_fallthru
          _
        // Predicated region
        $region53: #{tpu_custom_call.1} parent=39 // pred_check
          %p584 = pneg %p183
        $region54: #{tpu_custom_call.1} parent=39 // pred_check_branch
          %586 = sbr.rel (%p584) target = $region56
        $region55: #{tpu_custom_call.1} parent=39 // pred_region
          %s587 = smul.u32 4, %s29
          %s589 = ssub.s32 256, 256
          %590 = vsyncadd %s559, %s589
          %s591 = smul.addr %s587, 64
          %s592 = scalar_lea.hbm %s6, %s591
          %s593 = sshll.u32 %s562, 4
          %s594 = int_to_ptr.vmem [resolvable:$true] %s593
          %599 = dma.vmem_to_hbm [thread:$0]  %s594, 256, %s592, %s559, 64, 64, 4
        $region56: #{tpu_custom_call.1} parent=39 // pred_fallthru
          _
        // Predicated region
        $region57: #{tpu_custom_call.1} parent=39 // pred_check
          %p600 = pneg %p209
        $region58: #{tpu_custom_call.1} parent=39 // pred_check_branch
          %602 = sbr.rel (%p600) target = $region60
        $region59: #{tpu_custom_call.1} parent=39 // pred_region
          %s603 = smul.u32 4, %s29
          %s605 = ssub.s32 256, 256
          %606 = vsyncadd %s564, %s605
          %s607 = smul.addr %s603, 64
          %s608 = scalar_lea.hbm %s7, %s607
          %s609 = sshll.u32 %s567, 4
          %s610 = int_to_ptr.vmem [resolvable:$true] %s609
          %615 = dma.vmem_to_hbm [thread:$0]  %s610, 256, %s608, %s564, 64, 64, 4
        $region60: #{tpu_custom_call.1} parent=39 // pred_fallthru
          _
      $region40: #{tpu_custom_call.1} parent=5 // pred_fallthru
        _
      %p616 = scmp.le.s32.totalorder 2, %s24
      // Predicated region
      $region61: #{tpu_custom_call.1} parent=5 // pred_check
        %p617 = pneg %p616
      $region62: #{tpu_custom_call.1} parent=5 // pred_check_branch
        %619 = sbr.rel (%p617) target = $region64
      $region63: #{tpu_custom_call.1} parent=5 // pred_region
        %s620 = ssub.s32 %s24, 2
        // Predicated region
        $region65: #{tpu_custom_call.1} parent=63 // pred_check
          %p621 = pneg %p163
        $region66: #{tpu_custom_call.1} parent=63 // pred_check_branch
          %623 = sbr.rel (%p621) target = $region68
        $region67: #{tpu_custom_call.1} parent=63 // pred_region
          %s624 = sand.u32 %s148, 1
          %s625 = scalar_lea.sflag [#allocation4], %s624
          %s626 = sand.u32 %s148, 1
          %s627 = smul.addr %s626, 16
          %s628 = scalar_lea.vmem [#allocation7], %s627
          %629 = dma.done %s625, 256
        $region68: #{tpu_custom_call.1} parent=63 // pred_fallthru
          _
        // Predicated region
        $region69: #{tpu_custom_call.1} parent=63 // pred_check
          %p630 = pneg %p189
        $region70: #{tpu_custom_call.1} parent=63 // pred_check_branch
          %632 = sbr.rel (%p630) target = $region72
        $region71: #{tpu_custom_call.1} parent=63 // pred_region
          %s633 = sand.u32 %s30, 1
          %s634 = scalar_lea.sflag [#allocation9], %s633
          %s635 = sand.u32 %s174, 1
          %s636 = smul.addr %s635, 16
          %s637 = scalar_lea.vmem [#allocation8], %s636
          %638 = dma.done %s634, 256
        $region72: #{tpu_custom_call.1} parent=63 // pred_fallthru
          _
        // Predicated region
        $region73: #{tpu_custom_call.1} parent=63 // pred_check
          %p639 = pneg %p215
        $region74: #{tpu_custom_call.1} parent=63 // pred_check_branch
          %641 = sbr.rel (%p639) target = $region76
        $region75: #{tpu_custom_call.1} parent=63 // pred_region
          %s642 = sand.u32 %s30, 1
          %s643 = scalar_lea.sflag [#allocation9], %s642
          %s644 = sand.u32 %s200, 1
          %s645 = smul.addr %s644, 16
          %s646 = scalar_lea.vmem [#allocation10], %s645
          %647 = dma.done %s643, 256
        $region76: #{tpu_custom_call.1} parent=63 // pred_fallthru
          _
      $region64: #{tpu_custom_call.1} parent=5 // pred_fallthru
        _
    $region6: #{tpu_custom_call.1} parent=1 // loop_footer
      %s28 = sadd.s32 1, %s24
    $region7: #{tpu_custom_call.1} parent=1 // loop_footer_branch
      %23 = sbr.rel target = $region3
    $region8: #{tpu_custom_call.1} parent=1 // loop_exit
      _
    %648 = vsyncpa [#allocation3], 1
    %s649 = scalar_lea.sflag [#allocation3], 1
    %650 = vsyncpa %s649, 1
    %651 = vsyncpa [#allocation6], 1
    %652 = vsyncpa [#allocation4], 1
    %s653 = scalar_lea.sflag [#allocation4], 1
    %654 = vsyncpa %s653, 1
    %655 = vsyncpa [#allocation9], 1
    %s656 = scalar_lea.sflag [#allocation9], 1
    %657 = vsyncpa %s656, 1

</llo_original>
